<compile_context>
chip_gen: v6e
topology: v6e:2x2x1
jax: 0.10.0
libtpu: 0.0.40
codegen_flags: <defaults>
</compile_context>

<pallas_src>
import jax
import jax.numpy as jnp
from jax.experimental import pallas as pl
from jax.experimental.pallas import tpu as pltpu


def _round_up(x, m):
    return ((x + m - 1) // m) * m


def _expert_kernel(x_ref, w1t_ref, w3t_ref, w2t_ref, o_ref, acc_ref):
    # x_ref:   (tm, d_model)    token tile (re-used across all hidden chunks)
    # w1t_ref: (d_model, th)    chunk of W1^T
    # w3t_ref: (d_model, th)    chunk of W3^T
    # w2t_ref: (th, d_model)    chunk of W2^T
    # o_ref:   (tm, d_model)    output tile (written once, at the last h step)
    # acc_ref: (tm, d_model)    f32 accumulator scratch
    h = pl.program_id(1)

    @pl.when(h == 0)
    def _init():
        acc_ref[...] = jnp.zeros_like(acc_ref)

    x = x_ref[...]
    # TODO(synk): optionally fuse the W1/W3 projections into one stacked matmul
    # (modest win); kept separate for clarity.
    h1 = jnp.dot(x, w1t_ref[...], preferred_element_type=jnp.float32)
    h3 = jnp.dot(x, w3t_ref[...], preferred_element_type=jnp.float32)

    # SiLU(h1) * h3 in f32: sigmoid rides the EUP slot, multiplies on the VPU.
    gated = (h1 * jax.nn.sigmoid(h1)) * h3

    acc_ref[...] += jnp.dot(gated.astype(w2t_ref.dtype), w2t_ref[...],
                            preferred_element_type=jnp.float32)

    @pl.when(h == pl.num_programs(1) - 1)
    def _finalize():
        o_ref[...] = acc_ref[...].astype(o_ref.dtype)


def expert_forward_pretransposed(x, w1t, w3t, w2t, *, tm=256, th=2048,
                                 vmem_limit_bytes=None):
    """SwiGLU expert forward.

    x:   [tokens, d_model]
    w1t: [d_model, d_hidden]  (= torch w1.weight.T, transposed ONCE at setup)
    w3t: [d_model, d_hidden]  (= torch w3.weight.T)
    w2t: [d_hidden, d_model]  (= torch w2.weight.T)
    """
    tokens, d_model = x.shape
    d_hidden = w1t.shape[1]
    assert w1t.shape == (d_model, d_hidden)
    assert w3t.shape == (d_model, d_hidden)
    assert w2t.shape == (d_hidden, d_model)

    # --- token (M) tile: big, sublane-aligned, pad if the input is small -----
    sub = 8 if x.dtype == jnp.dtype(jnp.float32) else 16
    tm_eff = min(tm, _round_up(tokens, sub))
    tm_eff = max(sub, _round_up(tm_eff, sub))
    padded_tokens = _round_up(tokens, tm_eff)
    x_in = x
    if padded_tokens != tokens:
        x_in = jnp.pad(x, ((0, padded_tokens - tokens), (0, 0)))

    # --- hidden (reduction) chunk: lane-aligned divisor of d_hidden ----------
    th_eff = min(th, d_hidden)
    if th_eff < d_hidden:
        th_eff = max(128, (th_eff // 128) * 128)
        while th_eff > 128 and d_hidden % th_eff != 0:
            th_eff -= 128
        if th_eff < 128 or d_hidden % th_eff != 0:
            th_eff = d_hidden
    n_h = d_hidden // th_eff

    grid = (padded_tokens // tm_eff, n_h)

    # --- VMEM budget: double-buffered weight chunks + x/out tiles + acc ------
    wbytes = jnp.dtype(w1t.dtype).itemsize
    xbytes = jnp.dtype(x.dtype).itemsize
    per_step_weights = (2 * d_model * th_eff + th_eff * d_model) * wbytes
    io_tiles = 2 * tm_eff * d_model * xbytes
    acc_bytes = tm_eff * d_model * 4
    if vmem_limit_bytes is None:
        vmem_limit_bytes = 2 * (per_step_weights + io_tiles) + acc_bytes + (4 << 20)
        vmem_limit_bytes = max(vmem_limit_bytes, 32 << 20)
        vmem_limit_bytes = min(vmem_limit_bytes, 120 << 20)

    cost = pl.CostEstimate(
        flops=6 * tokens * d_model * d_hidden,
        transcendentals=tokens * d_hidden,
        bytes_accessed=(tokens * d_model * xbytes * 2
                        + 3 * d_model * d_hidden * wbytes),
    )

    out = pl.pallas_call(
        _expert_kernel,
        out_shape=jax.ShapeDtypeStruct((padded_tokens, d_model), x.dtype),
        grid_spec=pltpu.PrefetchScalarGridSpec(
            num_scalar_prefetch=0,
            grid=grid,
            in_specs=[
                pl.BlockSpec((tm_eff, d_model), lambda i, h: (i, 0)),   # x tile
                pl.BlockSpec((d_model, th_eff), lambda i, h: (0, h)),   # W1^T chunk
                pl.BlockSpec((d_model, th_eff), lambda i, h: (0, h)),   # W3^T chunk
                pl.BlockSpec((th_eff, d_model), lambda i, h: (h, 0)),   # W2^T chunk
            ],
            out_specs=pl.BlockSpec((tm_eff, d_model), lambda i, h: (i, 0)),
            scratch_shapes=[pltpu.VMEM((tm_eff, d_model), jnp.float32)],
        ),
        compiler_params=pltpu.CompilerParams(
            dimension_semantics=("parallel", "arbitrary"),
            vmem_limit_bytes=vmem_limit_bytes,
        ),
        cost_estimate=cost,
    )(x_in, w1t, w3t, w2t)

    if padded_tokens != tokens:
        out = out[:tokens]
    return out


def expert_ref(x, w1, w2, w3):
    # PyTorch Linear semantics: y = x @ W^T (weights stored [out, in]).
    h1 = x @ w1.T
    h3 = x @ w3.T
    return (jax.nn.silu(h1) * h3) @ w2.T


if __name__ == "__main__":
    # Small shapes consistent with the module: batch=2, seq=8, d_model=32, d_hidden=64.
    d_model, d_hidden = 32, 64
    batch, seq = 2, 8

    key = jax.random.PRNGKey(0)
    kx, k1, k2, k3 = jax.random.split(key, 4)

    x = jax.random.normal(kx, (batch, seq, d_model), dtype=jnp.float32)
    # PyTorch nn.Linear weight layout [out_features, in_features].
    w1 = jax.random.normal(k1, (d_hidden, d_model), dtype=jnp.float32) * 0.05
    w2 = jax.random.normal(k2, (d_model, d_hidden), dtype=jnp.float32) * 0.05
    w3 = jax.random.normal(k3, (d_hidden, d_model), dtype=jnp.float32) * 0.05

    # Transpose ONCE at parameter-setup time (not per forward call).
    w1t = jnp.asarray(w1.T)   # (d_model, d_hidden)
    w3t = jnp.asarray(w3.T)   # (d_model, d_hidden)
    w2t = jnp.asarray(w2.T)   # (d_hidden, d_model)

    x_flat = x.reshape(batch * seq, d_model)
    out = expert_forward_pretransposed(x_flat, w1t, w3t, w2t)
    out = jax.block_until_ready(out).reshape(batch, seq, d_model)

    ref = expert_ref(x, w1, w2, w3)
    assert out.shape == (batch, seq, d_model)
    assert jnp.allclose(out, ref, atol=1e-4, rtol=1e-4), "mismatch vs reference"

    print("KERNEL_OK")
</pallas_src>

<mosaic_0001>
module attributes {stable_mosaic.version = 11 : i64} {
  func.func @_expert_kernel(%arg0: i32, %arg1: i32, %arg2: memref<16x32xf32, #tpu.memory_space<vmem>>, %arg3: memref<32x64xf32, #tpu.memory_space<vmem>>, %arg4: memref<32x64xf32, #tpu.memory_space<vmem>>, %arg5: memref<64x32xf32, #tpu.memory_space<vmem>>, %arg6: memref<16x32xf32, #tpu.memory_space<vmem>>, %arg7: memref<16x32xf32, #tpu.memory_space<vmem>>) attributes {dimension_semantics = [#tpu.dimension_semantics<parallel>, #tpu.dimension_semantics<arbitrary>], iteration_bounds = array<i64: 1, 1>, scalar_prefetch = 0 : i64, scratch_operands = 1 : i64, tpu.core_type = #tpu.core_type<tc>, window_params = [{transform_indices = @transform_0, window_bounds = array<i64: 16, 32>}, {transform_indices = @transform_1, window_bounds = array<i64: 32, 64>}, {transform_indices = @transform_2, window_bounds = array<i64: 32, 64>}, {transform_indices = @transform_3, window_bounds = array<i64: 64, 32>}, {transform_indices = @transform_4, window_bounds = array<i64: 16, 32>}]} {
    %c0_i32 = arith.constant 0 : i32
    %0 = arith.cmpi eq, %arg1, %c0_i32 : i32
    %1 = arith.extui %0 : i1 to i32
    %c0_i32_0 = arith.constant 0 : i32
    %2 = arith.cmpi ne, %1, %c0_i32_0 : i32
    scf.if %2 {
      %cst_17 = arith.constant 0.000000e+00 : f32
      %23 = vector.broadcast %cst_17 : f32 to vector<16x32xf32>
      %c0_18 = arith.constant 0 : index
      %c0_19 = arith.constant 0 : index
      %24 = vector.load %arg7[%c0_18, %c0_19] : memref<16x32xf32, #tpu.memory_space<vmem>>, vector<16x32xf32>
      tpu.vector_store %arg7[%c0_18, %c0_19], %23 {strides = array<i32>} : memref<16x32xf32, #tpu.memory_space<vmem>>, vector<16x32xf32>,
    } else {
    }
    %c0 = arith.constant 0 : index
    %c0_1 = arith.constant 0 : index
    %3 = vector.load %arg2[%c0, %c0_1] : memref<16x32xf32, #tpu.memory_space<vmem>>, vector<16x32xf32>
    %c0_2 = arith.constant 0 : index
    %c0_3 = arith.constant 0 : index
    %4 = vector.load %arg3[%c0_2, %c0_3] : memref<32x64xf32, #tpu.memory_space<vmem>>, vector<32x64xf32>
    %cst = arith.constant dense<0.000000e+00> : vector<16x64xf32>
    %5 = tpu.matmul %3, %4, %cst {dimension_numbers = #tpu.dot_dimension_numbers<[1], [0], [0], [1], [0, 0, 1, 1], [], []>} : vector<16x32xf32>, vector<32x64xf32>, vector<16x64xf32> -> vector<16x64xf32>
    %c0_4 = arith.constant 0 : index
    %c0_5 = arith.constant 0 : index
    %6 = vector.load %arg4[%c0_4, %c0_5] : memref<32x64xf32, #tpu.memory_space<vmem>>, vector<32x64xf32>
    %cst_6 = arith.constant dense<0.000000e+00> : vector<16x64xf32>
    %7 = tpu.matmul %3, %6, %cst_6 {dimension_numbers = #tpu.dot_dimension_numbers<[1], [0], [0], [1], [0, 0, 1, 1], [], []>} : vector<16x32xf32>, vector<32x64xf32>, vector<16x64xf32> -> vector<16x64xf32>
    %8 = arith.negf %5 : vector<16x64xf32>
    %9 = math.exp %8 : vector<16x64xf32>
    %cst_7 = arith.constant 1.000000e+00 : f32
    %10 = vector.broadcast %cst_7 : f32 to vector<16x64xf32>
    %11 = arith.addf %10, %9 : vector<16x64xf32>
    %12 = arith.divf %10, %11 : vector<16x64xf32>
    %13 = arith.mulf %5, %12 : vector<16x64xf32>
    %14 = arith.mulf %13, %7 : vector<16x64xf32>
    %c0_8 = arith.constant 0 : index
    %c0_9 = arith.constant 0 : index
    %15 = vector.load %arg7[%c0_8, %c0_9] : memref<16x32xf32, #tpu.memory_space<vmem>>, vector<16x32xf32>
    %c0_10 = arith.constant 0 : index
    %c0_11 = arith.constant 0 : index
    %16 = vector.load %arg5[%c0_10, %c0_11] : memref<64x32xf32, #tpu.memory_space<vmem>>, vector<64x32xf32>
    %cst_12 = arith.constant dense<0.000000e+00> : vector<16x32xf32>
    %17 = tpu.matmul %14, %16, %cst_12 {dimension_numbers = #tpu.dot_dimension_numbers<[1], [0], [0], [1], [0, 0, 1, 1], [], []>} : vector<16x64xf32>, vector<64x32xf32>, vector<16x32xf32> -> vector<16x32xf32>
    %18 = arith.addf %15, %17 : vector<16x32xf32>
    %c0_13 = arith.constant 0 : index
    %c0_14 = arith.constant 0 : index
    %19 = vector.load %arg7[%c0_13, %c0_14] : memref<16x32xf32, #tpu.memory_space<vmem>>, vector<16x32xf32>
    tpu.vector_store %arg7[%c0_13, %c0_14], %18 {strides = array<i32>} : memref<16x32xf32, #tpu.memory_space<vmem>>, vector<16x32xf32>,
    %c0_i32_15 = arith.constant 0 : i32
    %20 = arith.cmpi eq, %arg1, %c0_i32_15 : i32
    %21 = arith.extui %20 : i1 to i32
    %c0_i32_16 = arith.constant 0 : i32
    %22 = arith.cmpi ne, %21, %c0_i32_16 : i32
    scf.if %22 {
      %c0_17 = arith.constant 0 : index
      %c0_18 = arith.constant 0 : index
      %23 = vector.load %arg7[%c0_17, %c0_18] : memref<16x32xf32, #tpu.memory_space<vmem>>, vector<16x32xf32>
      %c0_19 = arith.constant 0 : index
      %c0_20 = arith.constant 0 : index
      %24 = vector.load %arg6[%c0_19, %c0_20] : memref<16x32xf32, #tpu.memory_space<vmem>>, vector<16x32xf32>
      tpu.vector_store %arg6[%c0_19, %c0_20], %23 {strides = array<i32>} : memref<16x32xf32, #tpu.memory_space<vmem>>, vector<16x32xf32>,
    } else {
    }
    return
  }
  func.func @transform_0(%arg0: i32, %arg1: i32) -> (i32, i32) {
    %c0_i32 = arith.constant 0 : i32
    %c0_i32_0 = arith.constant 0 : i32
    return %arg0, %c0_i32 : i32, i32
  }
  func.func @transform_1(%arg0: i32, %arg1: i32) -> (i32, i32) {
    %c0_i32 = arith.constant 0 : i32
    %c0_i32_0 = arith.constant 0 : i32
    return %c0_i32, %arg1 : i32, i32
  }
  func.func @transform_2(%arg0: i32, %arg1: i32) -> (i32, i32) {
    %c0_i32 = arith.constant 0 : i32
    %c0_i32_0 = arith.constant 0 : i32
    return %c0_i32, %arg1 : i32, i32
  }
  func.func @transform_3(%arg0: i32, %arg1: i32) -> (i32, i32) {
    %c0_i32 = arith.constant 0 : i32
    %c0_i32_0 = arith.constant 0 : i32
    return %arg1, %c0_i32 : i32, i32
  }
  func.func @transform_4(%arg0: i32, %arg1: i32) -> (i32, i32) {
    %c0_i32 = arith.constant 0 : i32
    %c0_i32_0 = arith.constant 0 : i32
    return %arg0, %c0_i32 : i32, i32
  }
}

</mosaic_0001>

<llo_original>
// kernel: tpu_custom_call.1
$region0: #{tpu_custom_call.1}
  #allocation0 [shape = 'u32[]', space=smem, size = 0x4, offset = 0x4, fixed_abs, tag = 'smem constant byte address 0x4 - core index']
  #allocation1 [shape = 'u32[144,128]{1,0:T(1,128)}', space=vmem, size = 0x12000, scoped, tag = 'internal scratch']
  #allocation2 [shape = 'f32[16,32]{1,0:T(8,128)}', space=vmem, size = 0x2000, scoped, tag = 'scratch operand']
  %s0 = inlined_call_operand.vmem [shape: f32[16,32], index: 0, kind: input, shape index: {}]
  %s1 = inlined_call_operand.vmem [shape: f32[32,64], index: 1, kind: input, shape index: {}]
  %s2 = inlined_call_operand.vmem [shape: f32[32,64], index: 2, kind: input, shape index: {}]
  %s3 = inlined_call_operand.vmem [shape: f32[64,32], index: 3, kind: input, shape index: {}]
  %s4 = inlined_call_operand.hbm [shape: f32[16,32], index: 4, kind: output, shape index: {}]
  %s5 = sld [smem:[#allocation0]]
  $region34: #{tpu_custom_call.1} parent=0
    _
  %s7 = ssub.s32 1, %s5
  %s8 = scalar_select 0, %s7, %s5
  $region1: #{tpu_custom_call.1} parent=0
    #allocation3 [shape = 'u8[8192]{0}', space=vmem, size = 0x2000, scoped, tag = 'output window, operand 0, single buffered']
    #allocation4 [shape = 's32[1]{0}', space=sflag, size = 0x4, scoped, tag = 'scoped memory for tpu_custom_call.1']
    %9 = vsyncpa [#allocation4], 0
    // Predicated region
    $region2: #{tpu_custom_call.1} parent=1 // pred_check
      _
    $region3: #{tpu_custom_call.1} parent=1 // pred_check_branch
      %11 = sbr.rel (0) target = $region5
    $region4: #{tpu_custom_call.1} parent=1 // pred_region
      _
    $region5: #{tpu_custom_call.1} parent=1 // pred_fallthru
      _
    // Predicated region
    $region6: #{tpu_custom_call.1} parent=1 // pred_check
      _
    $region7: #{tpu_custom_call.1} parent=1 // pred_check_branch
      %13 = sbr.rel (0) target = $region9
    $region8: #{tpu_custom_call.1} parent=1 // pred_region
      _
    $region9: #{tpu_custom_call.1} parent=1 // pred_fallthru
      _
    // Predicated region
    $region10: #{tpu_custom_call.1} parent=1 // pred_check
      _
    $region11: #{tpu_custom_call.1} parent=1 // pred_check_branch
      %15 = sbr.rel (0) target = $region13
    $region12: #{tpu_custom_call.1} parent=1 // pred_region
      _
    $region13: #{tpu_custom_call.1} parent=1 // pred_fallthru
      _
    // Predicated region
    $region14: #{tpu_custom_call.1} parent=1 // pred_check
      _
    $region15: #{tpu_custom_call.1} parent=1 // pred_check_branch
      %17 = sbr.rel (0) target = $region17
    $region16: #{tpu_custom_call.1} parent=1 // pred_region
      _
    $region17: #{tpu_custom_call.1} parent=1 // pred_fallthru
      _
    %p18 = scmp.eq.s32.totalorder 0, 0
    // Predicated region
    $region18: #{tpu_custom_call.1} parent=1 // pred_check
      %p19 = pneg %p18
    $region19: #{tpu_custom_call.1} parent=1 // pred_check_branch
      %21 = sbr.rel (%p19) target = $region21
    $region20: #{tpu_custom_call.1} parent=1 // pred_region
      %vm22 = vcmask 261120
      %23 = vst.msk [vmem:[#allocation2] sm:$0xff] %vm22, 0.0
      %24 = vst.msk [vmem:[#allocation2 + $0x8] sm:$0xff] %vm22, 0.0
    $region21: #{tpu_custom_call.1} parent=1 // pred_fallthru
      _
    %v25 = vld [vmem:[%s0] sm:$0xff]
    %v26 = vld [vmem:[%s0 + $0x8] sm:$0xff]
    %v27 = vld [vmem:[%s1] sm:$0xff]
    %v28 = vld [vmem:[%s1 + $0x8] sm:$0xff]
    %v29 = vld [vmem:[%s1 + $0x10] sm:$0xff]
    %v30 = vld [vmem:[%s1 + $0x18] sm:$0xff]
    %vm31 = vcmask 261120
    %v33 = vsel %vm31, %v25, 0
    %v36 = vsel %vm31, %v26, 0
    %38 = vmatprep.subr.mxu0 0.0
    %39 = vmatpush1.msra.mxu0 0.0
    %40 = vmatprep.subr.mxu0 0.0
    %41 = vmatpush1.msra.mxu0 0.0
    %42 = vmatprep.subr.mxu0 0.0
    %43 = vmatpush1.msra.mxu0 0.0
    %44 = vmatprep.subr.mxu0 0.0
    %45 = vmatpush1.msra.mxu0 0.0
    %46 = vmatprep.subr.mxu0 0.0
    %47 = vmatpush1.msra.mxu0 0.0
    %48 = vmatprep.subr.mxu0 0.0
    %49 = vmatpush1.msra.mxu0 0.0
    %50 = vmatprep.subr.mxu0 0.0
    %51 = vmatpush1.msra.mxu0 0.0
    %52 = vmatprep.subr.mxu0 0.0
    %53 = vmatpush1.msra.mxu0 0.0
    %54 = vmatprep.subr.mxu0 0.0
    %55 = vmatpush1.msra.mxu0 0.0
    %56 = vmatprep.subr.mxu0 0.0
    %57 = vmatpush1.msra.mxu0 0.0
    %58 = vmatprep.subr.mxu0 0.0
    %59 = vmatpush1.msra.mxu0 0.0
    %60 = vmatprep.subr.mxu0 0.0
    %61 = vmatpush1.msra.mxu0 0.0
    %62 = vmatprep.subr.mxu0 0.0
    %63 = vmatpush1.msra.mxu0 %v30
    %64 = vmatprep.subr.mxu0 0.0
    %65 = vmatpush1.msra.mxu0 %v29
    %66 = vmatprep.subr.mxu0 0.0
    %67 = vmatpush1.msra.mxu0 %v28
    %68 = vmatprep.subr.mxu0 0.0
    %69 = vmatpush1.msra.mxu0 %v27
    %70 = vmatprep.subr.mxu0 0.0
    %71 = vmatpush2.msra.mxu0 0.0
    %72 = vmatprep.subr.mxu0 0.0
    %73 = vmatpush2.msra.mxu0 0.0
    %74 = vmatprep.subr.mxu0 0.0
    %75 = vmatpush2.msra.mxu0 0.0
    %76 = vmatprep.subr.mxu0 0.0
    %77 = vmatpush2.msra.mxu0 0.0
    %78 = vmatprep.subr.mxu0 0.0
    %79 = vmatpush2.msra.mxu0 0.0
    %80 = vmatprep.subr.mxu0 0.0
    %81 = vmatpush2.msra.mxu0 0.0
    %82 = vmatprep.subr.mxu0 0.0
    %83 = vmatpush2.msra.mxu0 0.0
    %84 = vmatprep.subr.mxu0 0.0
    %85 = vmatpush2.msra.mxu0 0.0
    %86 = vmatprep.subr.mxu0 0.0
    %87 = vmatpush2.msra.mxu0 0.0
    %88 = vmatprep.subr.mxu0 0.0
    %89 = vmatpush2.msra.mxu0 0.0
    %90 = vmatprep.subr.mxu0 0.0
    %91 = vmatpush2.msra.mxu0 0.0
    %92 = vmatprep.subr.mxu0 0.0
    %93 = vmatpush2.msra.mxu0 0.0
    %94 = vmatprep.subr.mxu0 0.0
    %95 = vmatpush2.msra.mxu0 0.0
    %96 = vmatprep.subr.mxu0 0.0
    %97 = vmatpush2.msra.mxu0 0.0
    %98 = vmatprep.subr.mxu0 0.0
    %99 = vmatpush2.msra.mxu0 0.0
    %100 = vmatprep.subr.mxu0 0.0
    %101 = vmatpush2.msra.mxu0 0.0
    %102 = vmatprep.mubr.f32.mxu0 0.0
    %103 = vmatmul.mubr.f32.gmra.mxu0 %v33
    %v104 = vpop.f32.mrf.mxu0
    %v105 = vadd.f32 0.0, %v104
    %v106 = vpop.f32.mrf.mxu0
    %107 = vmatprep.mubr.f32.mxu0 0.0
    %108 = vmatmul.mubr.f32.gmra.mxu0 %v36
    %v109 = vpop.f32.mrf.mxu0
    %v110 = vadd.f32 0.0, %v109
    %v111 = vpop.f32.mrf.mxu0
    %112 = vdwg.mxu0
    %v113 = vld [vmem:[%s2] sm:$0xff]
    %v114 = vld [vmem:[%s2 + $0x8] sm:$0xff]
    %v115 = vld [vmem:[%s2 + $0x10] sm:$0xff]
    %v116 = vld [vmem:[%s2 + $0x18] sm:$0xff]
    %117 = vmatprep.subr.mxu0 0.0
    %118 = vmatpush1.msra.mxu0 0.0
    %119 = vmatprep.subr.mxu0 0.0
    %120 = vmatpush1.msra.mxu0 0.0
    %121 = vmatprep.subr.mxu0 0.0
    %122 = vmatpush1.msra.mxu0 0.0
    %123 = vmatprep.subr.mxu0 0.0
    %124 = vmatpush1.msra.mxu0 0.0
    %125 = vmatprep.subr.mxu0 0.0
    %126 = vmatpush1.msra.mxu0 0.0
    %127 = vmatprep.subr.mxu0 0.0
    %128 = vmatpush1.msra.mxu0 0.0
    %129 = vmatprep.subr.mxu0 0.0
    %130 = vmatpush1.msra.mxu0 0.0
    %131 = vmatprep.subr.mxu0 0.0
    %132 = vmatpush1.msra.mxu0 0.0
    %133 = vmatprep.subr.mxu0 0.0
    %134 = vmatpush1.msra.mxu0 0.0
    %135 = vmatprep.subr.mxu0 0.0
    %136 = vmatpush1.msra.mxu0 0.0
    %137 = vmatprep.subr.mxu0 0.0
    %138 = vmatpush1.msra.mxu0 0.0
    %139 = vmatprep.subr.mxu0 0.0
    %140 = vmatpush1.msra.mxu0 0.0
    %141 = vmatprep.subr.mxu0 0.0
    %142 = vmatpush1.msra.mxu0 %v116
    %143 = vmatprep.subr.mxu0 0.0
    %144 = vmatpush1.msra.mxu0 %v115
    %145 = vmatprep.subr.mxu0 0.0
    %146 = vmatpush1.msra.mxu0 %v114
    %147 = vmatprep.subr.mxu0 0.0
    %148 = vmatpush1.msra.mxu0 %v113
    %149 = vmatprep.subr.mxu0 0.0
    %150 = vmatpush2.msra.mxu0 0.0
    %151 = vmatprep.subr.mxu0 0.0
    %152 = vmatpush2.msra.mxu0 0.0
    %153 = vmatprep.subr.mxu0 0.0
    %154 = vmatpush2.msra.mxu0 0.0
    %155 = vmatprep.subr.mxu0 0.0
    %156 = vmatpush2.msra.mxu0 0.0
    %157 = vmatprep.subr.mxu0 0.0
    %158 = vmatpush2.msra.mxu0 0.0
    %159 = vmatprep.subr.mxu0 0.0
    %160 = vmatpush2.msra.mxu0 0.0
    %161 = vmatprep.subr.mxu0 0.0
    %162 = vmatpush2.msra.mxu0 0.0
    %163 = vmatprep.subr.mxu0 0.0
    %164 = vmatpush2.msra.mxu0 0.0
    %165 = vmatprep.subr.mxu0 0.0
    %166 = vmatpush2.msra.mxu0 0.0
    %167 = vmatprep.subr.mxu0 0.0
    %168 = vmatpush2.msra.mxu0 0.0
    %169 = vmatprep.subr.mxu0 0.0
    %170 = vmatpush2.msra.mxu0 0.0
    %171 = vmatprep.subr.mxu0 0.0
    %172 = vmatpush2.msra.mxu0 0.0
    %173 = vmatprep.subr.mxu0 0.0
    %174 = vmatpush2.msra.mxu0 0.0
    %175 = vmatprep.subr.mxu0 0.0
    %176 = vmatpush2.msra.mxu0 0.0
    %177 = vmatprep.subr.mxu0 0.0
    %178 = vmatpush2.msra.mxu0 0.0
    %179 = vmatprep.subr.mxu0 0.0
    %180 = vmatpush2.msra.mxu0 0.0
    %181 = vmatprep.mubr.f32.mxu0 0.0
    %182 = vmatmul.mubr.f32.gmra.mxu0 %v33
    %v183 = vpop.f32.mrf.mxu0
    %v184 = vadd.f32 0.0, %v183
    %v185 = vpop.f32.mrf.mxu0
    %186 = vmatprep.mubr.f32.mxu0 0.0
    %187 = vmatmul.mubr.f32.gmra.mxu0 %v36
    %v188 = vpop.f32.mrf.mxu0
    %v189 = vadd.f32 0.0, %v188
    %v190 = vpop.f32.mrf.mxu0
    %191 = vdwg.mxu0
    %v192 = vxor.u32 %v105, 2147483648
    %v193 = vxor.u32 %v110, 2147483648
    %v194 = vmul.f32 %v192, 1.442695
    %v195 = vpow.pop %v194
    %v196 = vmul.f32 %v193, 1.442695
    %v197 = vpow.pop %v196
    %v198 = vadd.f32 %v195, 1.0
    %v199 = vadd.f32 %v197, 1.0
    %v200 = vrcp.pop %v198
    %v201 = vmul.f32 1.0, %v200
    %v202 = vrcp.pop %v199
    %v203 = vmul.f32 1.0, %v202
    %v204 = vmul.f32 %v105, %v201
    %v205 = vmul.f32 %v110, %v203
    %v206 = vmul.f32 %v204, %v184
    %v207 = vmul.f32 %v205, %v189
    %v208 = vld [vmem:[#allocation2] sm:$0xff]
    %v209 = vld [vmem:[#allocation2 + $0x8] sm:$0xff]
    %v210 = vld [vmem:[%s3] sm:$0xff]
    %v211 = vld [vmem:[%s3 + $0x8] sm:$0xff]
    %v212 = vld [vmem:[%s3 + $0x10] sm:$0xff]
    %v213 = vld [vmem:[%s3 + $0x18] sm:$0xff]
    %v214 = vld [vmem:[%s3 + $0x20] sm:$0xff]
    %v215 = vld [vmem:[%s3 + $0x28] sm:$0xff]
    %v216 = vld [vmem:[%s3 + $0x30] sm:$0xff]
    %v217 = vld [vmem:[%s3 + $0x38] sm:$0xff]
    %vm218 = vcmask 523264
    %v220 = vsel %vm218, %v206, 0
    %v223 = vsel %vm218, %v207, 0
    %225 = vmatprep.subr.mxu0 0.0
    %226 = vmatpush1.msra.mxu0 0.0
    %227 = vmatprep.subr.mxu0 0.0
    %228 = vmatpush1.msra.mxu0 0.0
    %229 = vmatprep.subr.mxu0 0.0
    %230 = vmatpush1.msra.mxu0 0.0
    %231 = vmatprep.subr.mxu0 0.0
    %232 = vmatpush1.msra.mxu0 0.0
    %233 = vmatprep.subr.mxu0 0.0
    %234 = vmatpush1.msra.mxu0 0.0
    %235 = vmatprep.subr.mxu0 0.0
    %236 = vmatpush1.msra.mxu0 0.0
    %237 = vmatprep.subr.mxu0 0.0
    %238 = vmatpush1.msra.mxu0 0.0
    %239 = vmatprep.subr.mxu0 0.0
    %240 = vmatpush1.msra.mxu0 0.0
    %241 = vmatprep.subr.mxu0 0.0
    %242 = vmatpush1.msra.mxu0 %v217
    %243 = vmatprep.subr.mxu0 0.0
    %244 = vmatpush1.msra.mxu0 %v216
    %245 = vmatprep.subr.mxu0 0.0
    %246 = vmatpush1.msra.mxu0 %v215
    %247 = vmatprep.subr.mxu0 0.0
    %248 = vmatpush1.msra.mxu0 %v214
    %249 = vmatprep.subr.mxu0 0.0
    %250 = vmatpush1.msra.mxu0 %v213
    %251 = vmatprep.subr.mxu0 0.0
    %252 = vmatpush1.msra.mxu0 %v212
    %253 = vmatprep.subr.mxu0 0.0
    %254 = vmatpush1.msra.mxu0 %v211
    %255 = vmatprep.subr.mxu0 0.0
    %256 = vmatpush1.msra.mxu0 %v210
    %257 = vmatprep.subr.mxu0 0.0
    %258 = vmatpush2.msra.mxu0 0.0
    %259 = vmatprep.subr.mxu0 0.0
    %260 = vmatpush2.msra.mxu0 0.0
    %261 = vmatprep.subr.mxu0 0.0
    %262 = vmatpush2.msra.mxu0 0.0
    %263 = vmatprep.subr.mxu0 0.0
    %264 = vmatpush2.msra.mxu0 0.0
    %265 = vmatprep.subr.mxu0 0.0
    %266 = vmatpush2.msra.mxu0 0.0
    %267 = vmatprep.subr.mxu0 0.0
    %268 = vmatpush2.msra.mxu0 0.0
    %269 = vmatprep.subr.mxu0 0.0
    %270 = vmatpush2.msra.mxu0 0.0
    %271 = vmatprep.subr.mxu0 0.0
    %272 = vmatpush2.msra.mxu0 0.0
    %273 = vmatprep.subr.mxu0 0.0
    %274 = vmatpush2.msra.mxu0 0.0
    %275 = vmatprep.subr.mxu0 0.0
    %276 = vmatpush2.msra.mxu0 0.0
    %277 = vmatprep.subr.mxu0 0.0
    %278 = vmatpush2.msra.mxu0 0.0
    %279 = vmatprep.subr.mxu0 0.0
    %280 = vmatpush2.msra.mxu0 0.0
    %281 = vmatprep.subr.mxu0 0.0
    %282 = vmatpush2.msra.mxu0 0.0
    %283 = vmatprep.subr.mxu0 0.0
    %284 = vmatpush2.msra.mxu0 0.0
    %285 = vmatprep.subr.mxu0 0.0
    %286 = vmatpush2.msra.mxu0 0.0
    %287 = vmatprep.subr.mxu0 0.0
    %288 = vmatpush2.msra.mxu0 0.0
    %289 = vmatprep.mubr.f32.mxu0 0.0
    %290 = vmatmul.mubr.f32.gmra.mxu0 %v220
    %v291 = vpop.f32.mrf.mxu0
    %v292 = vadd.f32 0.0, %v291
    %v293 = vpop.f32.mrf.mxu0
    %294 = vmatprep.mubr.f32.mxu0 0.0
    %295 = vmatmul.mubr.f32.gmra.mxu0 %v223
    %v296 = vpop.f32.mrf.mxu0
    %v297 = vadd.f32 0.0, %v296
    %v298 = vpop.f32.mrf.mxu0
    %299 = vdwg.mxu0
    %v300 = vadd.f32 %v208, %v292
    %v301 = vadd.f32 %v209, %v297
    %302 = vst.msk [vmem:[#allocation2] sm:$0xff] %vm31, %v300
    %303 = vst.msk [vmem:[#allocation2 + $0x8] sm:$0xff] %vm31, %v301
    // Predicated region
    $region22: #{tpu_custom_call.1} parent=1 // pred_check
      %p304 = pneg %p18
    $region23: #{tpu_custom_call.1} parent=1 // pred_check_branch
      %306 = sbr.rel (%p304) target = $region25
    $region24: #{tpu_custom_call.1} parent=1 // pred_region
      %v307 = vld [vmem:[#allocation2] sm:$0xff]
      %v308 = vld [vmem:[#allocation2 + $0x8] sm:$0xff]
      %309 = vst.msk [vmem:[#allocation3] sm:$0xff] %vm31, %v307
      %310 = vst.msk [vmem:[#allocation3 + $0x8] sm:$0xff] %vm31, %v308
    $region25: #{tpu_custom_call.1} parent=1 // pred_fallthru
      _
    // Predicated region
    $region26: #{tpu_custom_call.1} parent=1 // pred_check
      _
    $region27: #{tpu_custom_call.1} parent=1 // pred_check_branch
      %312 = sbr.rel (0) target = $region29
    $region28: #{tpu_custom_call.1} parent=1 // pred_region
      %s314 = ssub.s32 256, 256
      %315 = vsyncadd [#allocation4], %s314
      %s316 = sshll.u32 [#allocation3], 4
      %s317 = int_to_ptr.vmem [resolvable:$true] %s316
      %322 = dma.vmem_to_hbm [thread:$0]  %s317, 256, %s4, [#allocation4], 128, 128, 8
    $region29: #{tpu_custom_call.1} parent=1 // pred_fallthru
      _
    // Predicated region
    $region30: #{tpu_custom_call.1} parent=1 // pred_check
      _
    $region31: #{tpu_custom_call.1} parent=1 // pred_check_branch
      %324 = sbr.rel (0) target = $region33
    $region32: #{tpu_custom_call.1} parent=1 // pred_region
      %325 = dma.done [#allocation4], 256
    $region33: #{tpu_custom_call.1} parent=1 // pred_fallthru
      _
    %326 = vsyncpa [#allocation4], 1

</llo_original>
